<compile_context>
chip_gen: v7x
topology: tpu7x:2x2x1
jax: 0.10.0
libtpu: 0.0.40
codegen_flags: <defaults>
</compile_context>

<pallas_src>
import math
import functools

import jax
import jax.numpy as jnp
from jax import lax
from jax.experimental import pallas as pl
from jax.experimental.pallas import tpu as pltpu


def _round_up(v: int, m: int) -> int:
    return ((v + m - 1) // m) * m


def _clustering_kernel(ct_ref, c_sq_ref, x_ref, q_ref, *, alpha: float, exponent: float):
    # ct_ref:   (D, K_pad)  resident, pre-transposed centers scaled by -2
    # c_sq_ref: (1, K_pad)  resident ||c_k||^2; padded cols hold 1e30 (self-mask)
    # x_ref:    (TN, D)     streamed sample tile
    # q_ref:    (TN, K_pad) output tile (padded cols ~0, sliced off outside)
    x = x_ref[...]

    # ||x_n - c_k||^2 = ||x_n||^2 + ||c_k||^2 + (-2 x_n . c_k)   (MXU for the dot)
    x_sq = jnp.sum(x * x, axis=-1, keepdims=True)                       # (TN,1)     VPU
    xc = jnp.dot(x, ct_ref[...], preferred_element_type=jnp.float32)    # (TN,K_pad) MXU
    dist = jnp.maximum(x_sq + c_sq_ref[...] + xc, 0.0)                  # fp guard

    one_plus = 1.0 + dist * (1.0 / alpha)                               # >= 1

    # `exponent` is a static Python float -> pick the cheapest EUP/VPU path.
    if exponent == 1.0:
        q = pl.reciprocal(one_plus, approx=False)
    elif exponent == 0.5:
        q = lax.rsqrt(one_plus)
    elif exponent == 1.5:
        q = pl.reciprocal(one_plus, approx=False) * lax.rsqrt(one_plus)
    elif float(exponent).is_integer() and 2.0 <= exponent <= 8.0:
        q = lax.integer_pow(pl.reciprocal(one_plus, approx=False), int(exponent))
    else:
        # generic: (1 + d/a)^(-e) = exp(-e * log(1 + d/a)) -- one log + one exp (EUP)
        q = jnp.exp(-exponent * jnp.log(one_plus))

    # normalize across clusters: one reciprocal per row + one multiply per element
    denom_inv = pl.reciprocal(jnp.sum(q, axis=1, keepdims=True), approx=False)
    q_ref[...] = q * denom_inv


def clustering_forward(x, clustcenters, alpha: float = 1.0, tile_n=None):
    """x: (N, D) float32, clustcenters: (K, D) float32 -> q: (N, K) float32."""
    n, d = x.shape
    k, d2 = clustcenters.shape
    assert d == d2, "feature dims must match"

    x = x.astype(jnp.float32)
    c = clustcenters.astype(jnp.float32)

    # Lane-dense K: pad clusters to a multiple of 128.
    k_pad = _round_up(max(k, 128), 128)
    # centers^T pre-scaled by -2 (zeros in padded cols -> xc = 0 there)
    ct = jnp.zeros((d, k_pad), jnp.float32).at[:, :k].set(-2.0 * c.T)
    # ||c||^2, padded cols set to a huge FINITE value so padded q underflows to ~0
    c_sq = jnp.full((1, k_pad), 1e30, jnp.float32).at[0, :k].set(jnp.sum(c * c, axis=-1))

    # ---- per-generation VMEM budget -------------------------------------
    try:
        vmem_cap = int(pltpu.get_tpu_info().vmem_capacity_bytes)
    except Exception:
        vmem_cap = 64 << 20  # conservative (v7x-safe) fallback
    if vmem_cap >= (96 << 20):        # v5e / v6e: 128 MiB physical VMEM
        budget, tile_cap, limit_cap = 56 << 20, 4096, 96 << 20
    else:                             # v7x: 64 MiB physical VMEM
        budget, tile_cap, limit_cap = 24 << 20, 2048, 40 << 20

    # Accurate lane/sublane-padded block accounting.
    d_lane = _round_up(d, 128)        # x block: last dim pads to 128 lanes
    d_sub = _round_up(d, 8)           # ct block: second-to-last dim pads to 8 sublanes
    resident = 4 * (d_sub * k_pad + 8 * k_pad)      # single-buffered ct + c_sq
    per_row = 2 * 4 * (d_lane + k_pad)              # double-buffered x row + q row

    if tile_n is None:
        avail = budget - resident
        if avail < 256 * per_row:
            # TODO(synk): tile K with a second grid axis when the resident
            # center matrix is too large for a decent N tile.
            tile_n = 256
        else:
            tile_n = min(tile_cap, avail // per_row)
        tile_n = max(8, (tile_n // 8) * 8)
        # keep >= ~8 grid steps for large N so v7x can shard across its 2 TCs
        if n >= 8 * 256:
            tile_n = min(tile_n, max(256, _round_up(-(-n // 8), 8)))
    tile_n = int(max(8, min(tile_n, _round_up(n, 8))))
    grid = (pl.cdiv(n, tile_n),)

    vmem_needed = tile_n * per_row + resident
    vmem_limit = int(min(max(vmem_needed + (8 << 20), 16 << 20), limit_cap))

    kernel = functools.partial(
        _clustering_kernel, alpha=float(alpha), exponent=(float(alpha) + 1.0) / 2.0
    )

    def _call(single_buffer_resident: bool):
        resident_kw = (
            dict(pipeline_mode=pl.Buffered(1)) if single_buffer_resident else {}
        )
        return pl.pallas_call(
            kernel,
            out_shape=jax.ShapeDtypeStruct((n, k_pad), jnp.float32),
            grid=grid,
            in_specs=[
                pl.BlockSpec((d, k_pad), lambda i: (0, 0), **resident_kw),   # -2*C^T
                pl.BlockSpec((1, k_pad), lambda i: (0, 0), **resident_kw),   # ||c||^2
                pl.BlockSpec((tile_n, d), lambda i: (i, 0)),                 # x tiles
            ],
            out_specs=pl.BlockSpec((tile_n, k_pad), lambda i: (i, 0)),
            compiler_params=pltpu.CompilerParams(
                dimension_semantics=("parallel",),
                vmem_limit_bytes=vmem_limit,
            ),
        )(ct, c_sq, x)

    try:
        q_pad = _call(True)            # single-buffered resident centers
    except Exception:
        q_pad = _call(False)           # fallback: default double-buffering

    if k == k_pad:
        return q_pad                   # no extra HBM pass when K is lane-dense
    return q_pad[:, :k]


def init_clustcenters(key, n_clusters: int, input_shape: int):
    """xavier_uniform on a (n_clusters, input_shape) tensor."""
    bound = math.sqrt(6.0 / (n_clusters + input_shape))
    return jax.random.uniform(
        key, (n_clusters, input_shape), dtype=jnp.float32, minval=-bound, maxval=bound
    )


def clustering_forward_ref(x, clustcenters, alpha: float = 1.0):
    """Pure-JAX reference (exact translation of the torch forward)."""
    diff = x[:, None, :] - clustcenters[None, :, :]
    q = 1.0 / (1.0 + jnp.sum(diff * diff, axis=2) / alpha)
    q = q ** ((alpha + 1.0) / 2.0)
    return q / jnp.sum(q, axis=1, keepdims=True)


if __name__ == "__main__":
    key = jax.random.PRNGKey(0)
    k_centers, k_x, k_centers2, k_x2 = jax.random.split(key, 4)

    # case 1: module-scale demo, alpha == 1 (reciprocal path), single tile
    n_samples, n_features, n_clusters = 8, 32, 4
    centers = init_clustcenters(k_centers, n_clusters, n_features)
    x = jax.random.normal(k_x, (n_samples, n_features), dtype=jnp.float32)
    q = jax.block_until_ready(clustering_forward(x, centers, alpha=1.0))
    q_ref = clustering_forward_ref(x, centers, alpha=1.0)
    assert q.shape == (n_samples, n_clusters)
    assert jnp.allclose(q, q_ref, atol=1e-5, rtol=1e-5), "case 1 mismatch vs reference"

    # case 2: alpha != 1 (recip*rsqrt fast path), non-multiple-of-8 N, multi-tile grid
    n_samples2, n_features2, n_clusters2 = 300, 64, 10
    centers2 = init_clustcenters(k_centers2, n_clusters2, n_features2)
    x2 = jax.random.normal(k_x2, (n_samples2, n_features2), dtype=jnp.float32)
    q2 = jax.block_until_ready(clustering_forward(x2, centers2, alpha=2.0, tile_n=128))
    q2_ref = clustering_forward_ref(x2, centers2, alpha=2.0)
    assert q2.shape == (n_samples2, n_clusters2)
    assert jnp.allclose(q2, q2_ref, atol=1e-5, rtol=1e-5), "case 2 mismatch vs reference"

    print("KERNEL_OK")
</pallas_src>

<mosaic_0001>
module attributes {stable_mosaic.version = 11 : i64} {
  func.func @_clustering_kernel(%arg0: i32, %arg1: memref<32x128xf32, #tpu.memory_space<vmem>>, %arg2: memref<1x128xf32, #tpu.memory_space<vmem>>, %arg3: memref<8x32xf32, #tpu.memory_space<vmem>>, %arg4: memref<8x128xf32, #tpu.memory_space<vmem>>) attributes {dimension_semantics = [#tpu.dimension_semantics<parallel>], iteration_bounds = array<i64: 1>, scalar_prefetch = 0 : i64, scratch_operands = 0 : i64, tpu.core_type = #tpu.core_type<tc>, window_params = [{pipeline_mode = #tpu.pipeline_mode<synchronous>, transform_indices = @transform_0, window_bounds = array<i64: 32, 128>}, {pipeline_mode = #tpu.pipeline_mode<synchronous>, transform_indices = @transform_1, window_bounds = array<i64: 1, 128>}, {transform_indices = @transform_2, window_bounds = array<i64: 8, 32>}, {transform_indices = @transform_3, window_bounds = array<i64: 8, 128>}]} {
    %c0 = arith.constant 0 : index
    %c0_0 = arith.constant 0 : index
    %0 = vector.load %arg3[%c0, %c0_0] : memref<8x32xf32, #tpu.memory_space<vmem>>, vector<8x32xf32>
    %1 = arith.mulf %0, %0 : vector<8x32xf32>
    %cst = arith.constant dense<0.000000e+00> : vector<8xf32>
    %2 = vector.multi_reduction <add>, %1, %cst [1] : vector<8x32xf32> to vector<8xf32>
    %3 = vector.shape_cast %2 : vector<8xf32> to vector<8x1xf32>
    %c0_1 = arith.constant 0 : index
    %c0_2 = arith.constant 0 : index
    %4 = vector.load %arg1[%c0_1, %c0_2] : memref<32x128xf32, #tpu.memory_space<vmem>>, vector<32x128xf32>
    %cst_3 = arith.constant dense<0.000000e+00> : vector<8x128xf32>
    %5 = tpu.matmul %0, %4, %cst_3 {dimension_numbers = #tpu.dot_dimension_numbers<[1], [0], [0], [1], [0, 0, 1, 1], [], []>} : vector<8x32xf32>, vector<32x128xf32>, vector<8x128xf32> -> vector<8x128xf32>
    %c0_4 = arith.constant 0 : index
    %c0_5 = arith.constant 0 : index
    %6 = vector.load %arg2[%c0_4, %c0_5] : memref<1x128xf32, #tpu.memory_space<vmem>>, vector<1x128xf32>
    %7 = vector.broadcast %3 : vector<8x1xf32> to vector<8x128xf32>
    %8 = vector.broadcast %6 : vector<1x128xf32> to vector<8x128xf32>
    %9 = arith.addf %7, %8 : vector<8x128xf32>
    %10 = arith.addf %9, %5 : vector<8x128xf32>
    %cst_6 = arith.constant 0.000000e+00 : f32
    %11 = vector.broadcast %cst_6 : f32 to vector<8x128xf32>
    %12 = arith.maximumf %10, %11 : vector<8x128xf32>
    %cst_7 = arith.constant 1.000000e+00 : f32
    %13 = vector.broadcast %cst_7 : f32 to vector<8x128xf32>
    %14 = arith.mulf %12, %13 : vector<8x128xf32>
    %cst_8 = arith.constant 1.000000e+00 : f32
    %15 = vector.broadcast %cst_8 : f32 to vector<8x128xf32>
    %16 = arith.addf %15, %14 : vector<8x128xf32>
    %17 = tpu.reciprocal %16 : vector<8x128xf32> -> vector<8x128xf32>
    %cst_9 = arith.constant dense<0.000000e+00> : vector<8xf32>
    %18 = vector.multi_reduction <add>, %17, %cst_9 [1] : vector<8x128xf32> to vector<8xf32>
    %19 = vector.shape_cast %18 : vector<8xf32> to vector<8x1xf32>
    %20 = tpu.reciprocal %19 : vector<8x1xf32> -> vector<8x1xf32>
    %21 = vector.broadcast %20 : vector<8x1xf32> to vector<8x128xf32>
    %22 = arith.mulf %17, %21 : vector<8x128xf32>
    %c0_10 = arith.constant 0 : index
    %c0_11 = arith.constant 0 : index
    %23 = vector.load %arg4[%c0_10, %c0_11] : memref<8x128xf32, #tpu.memory_space<vmem>>, vector<8x128xf32>
    tpu.vector_store %arg4[%c0_10, %c0_11], %22 {strides = array<i32>} : memref<8x128xf32, #tpu.memory_space<vmem>>, vector<8x128xf32>,
    return
  }
  func.func @transform_0(%arg0: i32) -> (i32, i32) {
    %c0_i32 = arith.constant 0 : i32
    %c0_i32_0 = arith.constant 0 : i32
    %c0_i32_1 = arith.constant 0 : i32
    return %c0_i32, %c0_i32_0 : i32, i32
  }
  func.func @transform_1(%arg0: i32) -> (i32, i32) {
    %c0_i32 = arith.constant 0 : i32
    %c0_i32_0 = arith.constant 0 : i32
    %c0_i32_1 = arith.constant 0 : i32
    return %c0_i32, %c0_i32_0 : i32, i32
  }
  func.func @transform_2(%arg0: i32) -> (i32, i32) {
    %c0_i32 = arith.constant 0 : i32
    %c0_i32_0 = arith.constant 0 : i32
    return %arg0, %c0_i32 : i32, i32
  }
  func.func @transform_3(%arg0: i32) -> (i32, i32) {
    %c0_i32 = arith.constant 0 : i32
    %c0_i32_0 = arith.constant 0 : i32
    return %arg0, %c0_i32 : i32, i32
  }
}

module attributes {stable_mosaic.version = 11 : i64} {
  func.func @_clustering_kernel(%arg0: i32, %arg1: memref<32x128xf32, #tpu.memory_space<vmem>>, %arg2: memref<1x128xf32, #tpu.memory_space<vmem>>, %arg3: memref<8x32xf32, #tpu.memory_space<vmem>>, %arg4: memref<8x128xf32, #tpu.memory_space<vmem>>) attributes {dimension_semantics = [#tpu.dimension_semantics<parallel>], iteration_bounds = array<i64: 1>, scalar_prefetch = 0 : i64, scratch_operands = 0 : i64, tpu.core_type = #tpu.core_type<tc>, window_params = [{pipeline_mode = #tpu.pipeline_mode<synchronous>, transform_indices = @transform_0, window_bounds = array<i64: 32, 128>}, {pipeline_mode = #tpu.pipeline_mode<synchronous>, transform_indices = @transform_1, window_bounds = array<i64: 1, 128>}, {transform_indices = @transform_2, window_bounds = array<i64: 8, 32>}, {transform_indices = @transform_3, window_bounds = array<i64: 8, 128>}]} {
    %c0 = arith.constant 0 : index
    %c0_0 = arith.constant 0 : index
    %0 = vector.load %arg3[%c0, %c0_0] : memref<8x32xf32, #tpu.memory_space<vmem>>, vector<8x32xf32>
    %1 = arith.mulf %0, %0 : vector<8x32xf32>
    %cst = arith.constant dense<0.000000e+00> : vector<8xf32>
    %2 = vector.multi_reduction <add>, %1, %cst [1] : vector<8x32xf32> to vector<8xf32>
    %3 = vector.shape_cast %2 : vector<8xf32> to vector<8x1xf32>
    %c0_1 = arith.constant 0 : index
    %c0_2 = arith.constant 0 : index
    %4 = vector.load %arg1[%c0_1, %c0_2] : memref<32x128xf32, #tpu.memory_space<vmem>>, vector<32x128xf32>
    %cst_3 = arith.constant dense<0.000000e+00> : vector<8x128xf32>
    %5 = tpu.matmul %0, %4, %cst_3 {dimension_numbers = #tpu.dot_dimension_numbers<[1], [0], [0], [1], [0, 0, 1, 1], [], []>} : vector<8x32xf32>, vector<32x128xf32>, vector<8x128xf32> -> vector<8x128xf32>
    %c0_4 = arith.constant 0 : index
    %c0_5 = arith.constant 0 : index
    %6 = vector.load %arg2[%c0_4, %c0_5] : memref<1x128xf32, #tpu.memory_space<vmem>>, vector<1x128xf32>
    %7 = vector.broadcast %3 : vector<8x1xf32> to vector<8x128xf32>
    %8 = vector.broadcast %6 : vector<1x128xf32> to vector<8x128xf32>
    %9 = arith.addf %7, %8 : vector<8x128xf32>
    %10 = arith.addf %9, %5 : vector<8x128xf32>
    %cst_6 = arith.constant 0.000000e+00 : f32
    %11 = vector.broadcast %cst_6 : f32 to vector<8x128xf32>
    %12 = arith.maximumf %10, %11 : vector<8x128xf32>
    %cst_7 = arith.constant 1.000000e+00 : f32
    %13 = vector.broadcast %cst_7 : f32 to vector<8x128xf32>
    %14 = arith.mulf %12, %13 : vector<8x128xf32>
    %cst_8 = arith.constant 1.000000e+00 : f32
    %15 = vector.broadcast %cst_8 : f32 to vector<8x128xf32>
    %16 = arith.addf %15, %14 : vector<8x128xf32>
    %17 = tpu.reciprocal %16 : vector<8x128xf32> -> vector<8x128xf32>
    %cst_9 = arith.constant dense<0.000000e+00> : vector<8xf32>
    %18 = vector.multi_reduction <add>, %17, %cst_9 [1] : vector<8x128xf32> to vector<8xf32>
    %19 = vector.shape_cast %18 : vector<8xf32> to vector<8x1xf32>
    %20 = tpu.reciprocal %19 : vector<8x1xf32> -> vector<8x1xf32>
    %21 = vector.broadcast %20 : vector<8x1xf32> to vector<8x128xf32>
    %22 = arith.mulf %17, %21 : vector<8x128xf32>
    %c0_10 = arith.constant 0 : index
    %c0_11 = arith.constant 0 : index
    %23 = vector.load %arg4[%c0_10, %c0_11] : memref<8x128xf32, #tpu.memory_space<vmem>>, vector<8x128xf32>
    tpu.vector_store %arg4[%c0_10, %c0_11], %22 {strides = array<i32>} : memref<8x128xf32, #tpu.memory_space<vmem>>, vector<8x128xf32>,
    return
  }
  func.func @transform_0(%arg0: i32) -> (i32, i32) {
    %c0_i32 = arith.constant 0 : i32
    %c0_i32_0 = arith.constant 0 : i32
    %c0_i32_1 = arith.constant 0 : i32
    return %c0_i32, %c0_i32_0 : i32, i32
  }
  func.func @transform_1(%arg0: i32) -> (i32, i32) {
    %c0_i32 = arith.constant 0 : i32
    %c0_i32_0 = arith.constant 0 : i32
    %c0_i32_1 = arith.constant 0 : i32
    return %c0_i32, %c0_i32_0 : i32, i32
  }
  func.func @transform_2(%arg0: i32) -> (i32, i32) {
    %c0_i32 = arith.constant 0 : i32
    %c0_i32_0 = arith.constant 0 : i32
    return %arg0, %c0_i32 : i32, i32
  }
  func.func @transform_3(%arg0: i32) -> (i32, i32) {
    %c0_i32 = arith.constant 0 : i32
    %c0_i32_0 = arith.constant 0 : i32
    return %arg0, %c0_i32 : i32, i32
  }
}

</mosaic_0001>

<llo_original>
// kernel: tpu_custom_call.1
$region0: #{tpu_custom_call.1}
  #allocation0 [shape = 'u32[]', space=smem, size = 0x4, offset = 0x4, fixed_abs, tag = 'smem constant byte address 0x4 - core index']
  #allocation1 [shape = 'u32[144,128]{1,0:T(1,128)}', space=vmem, size = 0x12000, scoped, tag = 'internal scratch']
  %s0 = inlined_call_operand.hbm [shape: f32[32,128], index: 0, kind: input, shape index: {}]
  %s1 = inlined_call_operand.vmem [shape: f32[1,128], index: 1, kind: input, shape index: {}]
  %s2 = inlined_call_operand.hbm [shape: f32[8,32], index: 2, kind: input, shape index: {}]
  %s3 = inlined_call_operand.hbm [shape: f32[8,128], index: 3, kind: output, shape index: {}]
  %s4 = sld [smem:[#allocation0]]
  $region30: #{tpu_custom_call.1} parent=0
    _
  %s6 = ssub.s32 1, %s4
  %s7 = scalar_select 0, %s6, %s4
  $region1: #{tpu_custom_call.1} parent=0
    #allocation2 [shape = 'u8[16384]{0}', space=vmem, size = 0x4000, scoped, tag = 'input window, operand 0, single buffered']
    #allocation3 [shape = 's32[1]{0}', space=sflag, size = 0x4, scoped, tag = 'scoped memory for tpu_custom_call.1']
    #allocation4 [shape = 's32[1]{0}', space=sflag, size = 0x4, scoped, tag = 'scoped memory for tpu_custom_call.1']
    #allocation5 [shape = 'u8[4096]{0}', space=vmem, size = 0x1000, scoped, tag = 'input window, operand 2, single buffered']
    #allocation6 [shape = 's32[1]{0}', space=sflag, size = 0x4, scoped, tag = 'scoped memory for tpu_custom_call.1']
    #allocation7 [shape = 'u8[4096]{0}', space=vmem, size = 0x1000, scoped, tag = 'output window, operand 0, single buffered']
    %8 = vsyncpa [#allocation3], 0
    %9 = vsyncpa [#allocation6], 0
    %10 = vsyncpa [#allocation4], 0
    // Predicated region
    $region2: #{tpu_custom_call.1} parent=1 // pred_check
      _
    $region3: #{tpu_custom_call.1} parent=1 // pred_check_branch
      %12 = sbr.rel (0) target = $region5
    $region4: #{tpu_custom_call.1} parent=1 // pred_region
      %s14 = ssub.s32 512, 512
      %15 = vsyncadd [#allocation3], %s14
      %s16 = sshll.u32 [#allocation2], 4
      %s17 = int_to_ptr.vmem [resolvable:$true] %s16
      %22 = dma.hbm_to_vmem [thread:$0]  %s0, 512, %s17, [#allocation3], 128, 128, 8
    $region5: #{tpu_custom_call.1} parent=1 // pred_fallthru
      _
    // Predicated region
    $region6: #{tpu_custom_call.1} parent=1 // pred_check
      _
    $region7: #{tpu_custom_call.1} parent=1 // pred_check_branch
      %24 = sbr.rel (0) target = $region9
    $region8: #{tpu_custom_call.1} parent=1 // pred_region
      _
    $region9: #{tpu_custom_call.1} parent=1 // pred_fallthru
      _
    // Predicated region
    $region10: #{tpu_custom_call.1} parent=1 // pred_check
      _
    $region11: #{tpu_custom_call.1} parent=1 // pred_check_branch
      %26 = sbr.rel (0) target = $region13
    $region12: #{tpu_custom_call.1} parent=1 // pred_region
      %s28 = ssub.s32 128, 128
      %29 = vsyncadd [#allocation6], %s28
      %s31 = sshll.u32 [#allocation5], 4
      %s32 = int_to_ptr.vmem [resolvable:$true] %s31
      %34 = dma.hbm_to_vmem [thread:$0]  %s2, 128, %s32, [#allocation6]
    $region13: #{tpu_custom_call.1} parent=1 // pred_fallthru
      _
    // Predicated region
    $region14: #{tpu_custom_call.1} parent=1 // pred_check
      _
    $region15: #{tpu_custom_call.1} parent=1 // pred_check_branch
      %36 = sbr.rel (0) target = $region17
    $region16: #{tpu_custom_call.1} parent=1 // pred_region
      %37 = dma.done [#allocation3], 512
    $region17: #{tpu_custom_call.1} parent=1 // pred_fallthru
      _
    // Predicated region
    $region18: #{tpu_custom_call.1} parent=1 // pred_check
      _
    $region19: #{tpu_custom_call.1} parent=1 // pred_check_branch
      %39 = sbr.rel (0) target = $region21
    $region20: #{tpu_custom_call.1} parent=1 // pred_region
      %40 = dma.done [#allocation6], 128
    $region21: #{tpu_custom_call.1} parent=1 // pred_fallthru
      _
    %v41 = vld [vmem:[#allocation5] sm:$0xff]
    %v42 = vmul.f32 %v41, %v41
    %vm43 = vcmask 261120
    %v44 = vsel %vm43, %v42, 0.0
    %45 = vadd.xlane.f32.xlu0 %v44
    %v46 = vpop.xlane.xlu0 %45
    %v47 = vld [vmem:[#allocation2] sm:$0xff]
    %v48 = vld [vmem:[#allocation2 + $0x8] sm:$0xff]
    %v49 = vld [vmem:[#allocation2 + $0x10] sm:$0xff]
    %v50 = vld [vmem:[#allocation2 + $0x18] sm:$0xff]
    %v52 = vsel %vm43, %v41, 0
    %54 = vmatprep.subr.mxu0 0.0
    %55 = vmatpush1.msra.mxu0 %v47
    %56 = vmatprep.subr.mxu0 0.0
    %57 = vmatpush1.msra.mxu0 %v48
    %58 = vmatprep.subr.mxu0 0.0
    %59 = vmatpush1.msra.mxu0 %v49
    %60 = vmatprep.subr.mxu0 0.0
    %61 = vmatpush1.msra.mxu0 %v50
    %62 = vmatprep.subr.mxu0 0.0
    %63 = vmatpush1.msra.mxu0 0.0
    %64 = vmatprep.subr.mxu0 0.0
    %65 = vmatpush1.msra.mxu0 0.0
    %66 = vmatprep.subr.mxu0 0.0
    %67 = vmatpush1.msra.mxu0 0.0
    %68 = vmatprep.subr.mxu0 0.0
    %69 = vmatpush1.msra.mxu0 0.0
    %70 = vmatprep.subr.mxu0 0.0
    %71 = vmatpush1.msra.mxu0 0.0
    %72 = vmatprep.subr.mxu0 0.0
    %73 = vmatpush1.msra.mxu0 0.0
    %74 = vmatprep.subr.mxu0 0.0
    %75 = vmatpush1.msra.mxu0 0.0
    %76 = vmatprep.subr.mxu0 0.0
    %77 = vmatpush1.msra.mxu0 0.0
    %78 = vmatprep.subr.mxu0 0.0
    %79 = vmatpush1.msra.mxu0 0.0
    %80 = vmatprep.subr.mxu0 0.0
    %81 = vmatpush1.msra.mxu0 0.0
    %82 = vmatprep.subr.mxu0 0.0
    %83 = vmatpush1.msra.mxu0 0.0
    %84 = vmatprep.subr.mxu0 0.0
    %85 = vmatpush1.msra.mxu0 0.0
    %86 = vmatprep.subr.mxu0 0.0
    %87 = vmatpush1.msra.mxu0 0.0
    %88 = vmatprep.subr.mxu0 0.0
    %89 = vmatpush1.msra.mxu0 0.0
    %90 = vmatprep.subr.mxu0 0.0
    %91 = vmatpush1.msra.mxu0 0.0
    %92 = vmatprep.subr.mxu0 0.0
    %93 = vmatpush1.msra.mxu0 0.0
    %94 = vmatprep.subr.mxu0 0.0
    %95 = vmatpush1.msra.mxu0 0.0
    %96 = vmatprep.subr.mxu0 0.0
    %97 = vmatpush1.msra.mxu0 0.0
    %98 = vmatprep.subr.mxu0 0.0
    %99 = vmatpush1.msra.mxu0 0.0
    %100 = vmatprep.subr.mxu0 0.0
    %101 = vmatpush1.msra.mxu0 0.0
    %102 = vmatprep.subr.mxu0 0.0
    %103 = vmatpush1.msra.mxu0 0.0
    %104 = vmatprep.subr.mxu0 0.0
    %105 = vmatpush1.msra.mxu0 0.0
    %106 = vmatprep.subr.mxu0 0.0
    %107 = vmatpush1.msra.mxu0 0.0
    %108 = vmatprep.subr.mxu0 0.0
    %109 = vmatpush1.msra.mxu0 0.0
    %110 = vmatprep.subr.mxu0 0.0
    %111 = vmatpush1.msra.mxu0 0.0
    %112 = vmatprep.subr.mxu0 0.0
    %113 = vmatpush1.msra.mxu0 0.0
    %114 = vmatprep.subr.mxu0 0.0
    %115 = vmatpush1.msra.mxu0 0.0
    %116 = vmatprep.subr.mxu0 0.0
    %117 = vmatpush1.msra.mxu0 0.0
    %118 = vmatprep.mubr.f32.mxu0 0.0
    %119 = vmatmul.mubr.f32.gmra.mrb[0].mxu0 %v52
    %v120 = vpop.f32.mrb[0].mxu0
    %v121 = vadd.f32 0.0, %v120
    %v122 = vpop.f32.mrb[0].mxu0
    %123 = vdwg.mxu0
    %v124 = vld [vmem:[%s1] sm:$0x1]
    %v126 = vlaneseq
    %v127 = vshrl.u32 %v126, 7
    %v128 = vsub.s32 0, %v127
    %v129 = vrot.slane %v124, %v128
    %v131 = vadd.f32 %v46, %v129
    %v132 = vadd.f32 %v131, %v121
    %v133 = vmax.f32 %v132, 0.0
    %v134 = vadd.f32 %v133, 1.0
    %v135 = vrcp.pop %v134
    %136 = vadd.xlane.f32.xlu0 %v135
    %v137 = vpop.xlane.xlu0 %136
    %v138 = vrcp.pop %v137
    %v139 = vmul.f32 %v135, %v138
    %140 = vst [vmem:[#allocation7] sm:$0xff] %v139
    // Predicated region
    $region22: #{tpu_custom_call.1} parent=1 // pred_check
      _
    $region23: #{tpu_custom_call.1} parent=1 // pred_check_branch
      %142 = sbr.rel (0) target = $region25
    $region24: #{tpu_custom_call.1} parent=1 // pred_region
      %s144 = ssub.s32 128, 128
      %145 = vsyncadd [#allocation4], %s144
      %s147 = sshll.u32 [#allocation7], 4
      %s148 = int_to_ptr.vmem [resolvable:$true] %s147
      %150 = dma.vmem_to_hbm [thread:$0]  %s148, 128, %s3, [#allocation4]
    $region25: #{tpu_custom_call.1} parent=1 // pred_fallthru
      _
    // Predicated region
    $region26: #{tpu_custom_call.1} parent=1 // pred_check
      _
    $region27: #{tpu_custom_call.1} parent=1 // pred_check_branch
      %152 = sbr.rel (0) target = $region29
    $region28: #{tpu_custom_call.1} parent=1 // pred_region
      %153 = dma.done [#allocation4], 128
    $region29: #{tpu_custom_call.1} parent=1 // pred_fallthru
      _
    %154 = vsyncpa [#allocation3], 1
    %155 = vsyncpa [#allocation6], 1
    %156 = vsyncpa [#allocation4], 1

// kernel: tpu_custom_call.1
$region0: #{tpu_custom_call.1}
  #allocation0 [shape = 'u32[]', space=smem, size = 0x4, offset = 0x4, fixed_abs, tag = 'smem constant byte address 0x4 - core index']
  #allocation1 [shape = 'u32[144,128]{1,0:T(1,128)}', space=vmem, size = 0x12000, scoped, tag = 'internal scratch']
  %s0 = inlined_call_operand.hbm [shape: f32[32,128], index: 0, kind: input, shape index: {}]
  %s1 = inlined_call_operand.vmem [shape: f32[1,128], index: 1, kind: input, shape index: {}]
  %s2 = inlined_call_operand.hbm [shape: f32[8,32], index: 2, kind: input, shape index: {}]
  %s3 = inlined_call_operand.hbm [shape: f32[8,128], index: 3, kind: output, shape index: {}]
  %s4 = sld [smem:[#allocation0]]
  $region30: #{tpu_custom_call.1} parent=0
    _
  %s6 = ssub.s32 1, %s4
  %s7 = scalar_select 0, %s6, %s4
  $region1: #{tpu_custom_call.1} parent=0
    #allocation2 [shape = 'u8[16384]{0}', space=vmem, size = 0x4000, scoped, tag = 'input window, operand 0, single buffered']
    #allocation3 [shape = 's32[1]{0}', space=sflag, size = 0x4, scoped, tag = 'scoped memory for tpu_custom_call.1']
    #allocation4 [shape = 's32[1]{0}', space=sflag, size = 0x4, scoped, tag = 'scoped memory for tpu_custom_call.1']
    #allocation5 [shape = 'u8[4096]{0}', space=vmem, size = 0x1000, scoped, tag = 'input window, operand 2, single buffered']
    #allocation6 [shape = 's32[1]{0}', space=sflag, size = 0x4, scoped, tag = 'scoped memory for tpu_custom_call.1']
    #allocation7 [shape = 'u8[4096]{0}', space=vmem, size = 0x1000, scoped, tag = 'output window, operand 0, single buffered']
    %8 = vsyncpa [#allocation3], 0
    %9 = vsyncpa [#allocation6], 0
    %10 = vsyncpa [#allocation4], 0
    // Predicated region
    $region2: #{tpu_custom_call.1} parent=1 // pred_check
      _
    $region3: #{tpu_custom_call.1} parent=1 // pred_check_branch
      %12 = sbr.rel (0) target = $region5
    $region4: #{tpu_custom_call.1} parent=1 // pred_region
      %s14 = ssub.s32 512, 512
      %15 = vsyncadd [#allocation3], %s14
      %s16 = sshll.u32 [#allocation2], 4
      %s17 = int_to_ptr.vmem [resolvable:$true] %s16
      %22 = dma.hbm_to_vmem [thread:$0]  %s0, 512, %s17, [#allocation3], 128, 128, 8
    $region5: #{tpu_custom_call.1} parent=1 // pred_fallthru
      _
    // Predicated region
    $region6: #{tpu_custom_call.1} parent=1 // pred_check
      _
    $region7: #{tpu_custom_call.1} parent=1 // pred_check_branch
      %24 = sbr.rel (0) target = $region9
    $region8: #{tpu_custom_call.1} parent=1 // pred_region
      _
    $region9: #{tpu_custom_call.1} parent=1 // pred_fallthru
      _
    // Predicated region
    $region10: #{tpu_custom_call.1} parent=1 // pred_check
      _
    $region11: #{tpu_custom_call.1} parent=1 // pred_check_branch
      %26 = sbr.rel (0) target = $region13
    $region12: #{tpu_custom_call.1} parent=1 // pred_region
      %s28 = ssub.s32 128, 128
      %29 = vsyncadd [#allocation6], %s28
      %s31 = sshll.u32 [#allocation5], 4
      %s32 = int_to_ptr.vmem [resolvable:$true] %s31
      %34 = dma.hbm_to_vmem [thread:$0]  %s2, 128, %s32, [#allocation6]
    $region13: #{tpu_custom_call.1} parent=1 // pred_fallthru
      _
    // Predicated region
    $region14: #{tpu_custom_call.1} parent=1 // pred_check
      _
    $region15: #{tpu_custom_call.1} parent=1 // pred_check_branch
      %36 = sbr.rel (0) target = $region17
    $region16: #{tpu_custom_call.1} parent=1 // pred_region
      %37 = dma.done [#allocation3], 512
    $region17: #{tpu_custom_call.1} parent=1 // pred_fallthru
      _
    // Predicated region
    $region18: #{tpu_custom_call.1} parent=1 // pred_check
      _
    $region19: #{tpu_custom_call.1} parent=1 // pred_check_branch
      %39 = sbr.rel (0) target = $region21
    $region20: #{tpu_custom_call.1} parent=1 // pred_region
      %40 = dma.done [#allocation6], 128
    $region21: #{tpu_custom_call.1} parent=1 // pred_fallthru
      _
    %v41 = vld [vmem:[#allocation5] sm:$0xff]
    %v42 = vmul.f32 %v41, %v41
    %vm43 = vcmask 261120
    %v44 = vsel %vm43, %v42, 0.0
    %45 = vadd.xlane.f32.xlu0 %v44
    %v46 = vpop.xlane.xlu0 %45
    %v47 = vld [vmem:[#allocation2] sm:$0xff]
    %v48 = vld [vmem:[#allocation2 + $0x8] sm:$0xff]
    %v49 = vld [vmem:[#allocation2 + $0x10] sm:$0xff]
    %v50 = vld [vmem:[#allocation2 + $0x18] sm:$0xff]
    %v52 = vsel %vm43, %v41, 0
    %54 = vmatprep.subr.mxu0 0.0
    %55 = vmatpush1.msra.mxu0 %v47
    %56 = vmatprep.subr.mxu0 0.0
    %57 = vmatpush1.msra.mxu0 %v48
    %58 = vmatprep.subr.mxu0 0.0
    %59 = vmatpush1.msra.mxu0 %v49
    %60 = vmatprep.subr.mxu0 0.0
    %61 = vmatpush1.msra.mxu0 %v50
    %62 = vmatprep.subr.mxu0 0.0
    %63 = vmatpush1.msra.mxu0 0.0
    %64 = vmatprep.subr.mxu0 0.0
    %65 = vmatpush1.msra.mxu0 0.0
    %66 = vmatprep.subr.mxu0 0.0
    %67 = vmatpush1.msra.mxu0 0.0
    %68 = vmatprep.subr.mxu0 0.0
    %69 = vmatpush1.msra.mxu0 0.0
    %70 = vmatprep.subr.mxu0 0.0
    %71 = vmatpush1.msra.mxu0 0.0
    %72 = vmatprep.subr.mxu0 0.0
    %73 = vmatpush1.msra.mxu0 0.0
    %74 = vmatprep.subr.mxu0 0.0
    %75 = vmatpush1.msra.mxu0 0.0
    %76 = vmatprep.subr.mxu0 0.0
    %77 = vmatpush1.msra.mxu0 0.0
    %78 = vmatprep.subr.mxu0 0.0
    %79 = vmatpush1.msra.mxu0 0.0
    %80 = vmatprep.subr.mxu0 0.0
    %81 = vmatpush1.msra.mxu0 0.0
    %82 = vmatprep.subr.mxu0 0.0
    %83 = vmatpush1.msra.mxu0 0.0
    %84 = vmatprep.subr.mxu0 0.0
    %85 = vmatpush1.msra.mxu0 0.0
    %86 = vmatprep.subr.mxu0 0.0
    %87 = vmatpush1.msra.mxu0 0.0
    %88 = vmatprep.subr.mxu0 0.0
    %89 = vmatpush1.msra.mxu0 0.0
    %90 = vmatprep.subr.mxu0 0.0
    %91 = vmatpush1.msra.mxu0 0.0
    %92 = vmatprep.subr.mxu0 0.0
    %93 = vmatpush1.msra.mxu0 0.0
    %94 = vmatprep.subr.mxu0 0.0
    %95 = vmatpush1.msra.mxu0 0.0
    %96 = vmatprep.subr.mxu0 0.0
    %97 = vmatpush1.msra.mxu0 0.0
    %98 = vmatprep.subr.mxu0 0.0
    %99 = vmatpush1.msra.mxu0 0.0
    %100 = vmatprep.subr.mxu0 0.0
    %101 = vmatpush1.msra.mxu0 0.0
    %102 = vmatprep.subr.mxu0 0.0
    %103 = vmatpush1.msra.mxu0 0.0
    %104 = vmatprep.subr.mxu0 0.0
    %105 = vmatpush1.msra.mxu0 0.0
    %106 = vmatprep.subr.mxu0 0.0
    %107 = vmatpush1.msra.mxu0 0.0
    %108 = vmatprep.subr.mxu0 0.0
    %109 = vmatpush1.msra.mxu0 0.0
    %110 = vmatprep.subr.mxu0 0.0
    %111 = vmatpush1.msra.mxu0 0.0
    %112 = vmatprep.subr.mxu0 0.0
    %113 = vmatpush1.msra.mxu0 0.0
    %114 = vmatprep.subr.mxu0 0.0
    %115 = vmatpush1.msra.mxu0 0.0
    %116 = vmatprep.subr.mxu0 0.0
    %117 = vmatpush1.msra.mxu0 0.0
    %118 = vmatprep.mubr.f32.mxu0 0.0
    %119 = vmatmul.mubr.f32.gmra.mrb[0].mxu0 %v52
    %v120 = vpop.f32.mrb[0].mxu0
    %v121 = vadd.f32 0.0, %v120
    %v122 = vpop.f32.mrb[0].mxu0
    %123 = vdwg.mxu0
    %v124 = vld [vmem:[%s1] sm:$0x1]
    %v126 = vlaneseq
    %v127 = vshrl.u32 %v126, 7
    %v128 = vsub.s32 0, %v127
    %v129 = vrot.slane %v124, %v128
    %v131 = vadd.f32 %v46, %v129
    %v132 = vadd.f32 %v131, %v121
    %v133 = vmax.f32 %v132, 0.0
    %v134 = vadd.f32 %v133, 1.0
    %v135 = vrcp.pop %v134
    %136 = vadd.xlane.f32.xlu0 %v135
    %v137 = vpop.xlane.xlu0 %136
    %v138 = vrcp.pop %v137
    %v139 = vmul.f32 %v135, %v138
    %140 = vst [vmem:[#allocation7] sm:$0xff] %v139
    // Predicated region
    $region22: #{tpu_custom_call.1} parent=1 // pred_check
      _
    $region23: #{tpu_custom_call.1} parent=1 // pred_check_branch
      %142 = sbr.rel (0) target = $region25
    $region24: #{tpu_custom_call.1} parent=1 // pred_region
      %s144 = ssub.s32 128, 128
      %145 = vsyncadd [#allocation4], %s144
      %s147 = sshll.u32 [#allocation7], 4
      %s148 = int_to_ptr.vmem [resolvable:$true] %s147
      %150 = dma.vmem_to_hbm [thread:$0]  %s148, 128, %s3, [#allocation4]
    $region25: #{tpu_custom_call.1} parent=1 // pred_fallthru
      _
    // Predicated region
    $region26: #{tpu_custom_call.1} parent=1 // pred_check
      _
    $region27: #{tpu_custom_call.1} parent=1 // pred_check_branch
      %152 = sbr.rel (0) target = $region29
    $region28: #{tpu_custom_call.1} parent=1 // pred_region
      %153 = dma.done [#allocation4], 128
    $region29: #{tpu_custom_call.1} parent=1 // pred_fallthru
      _
    %154 = vsyncpa [#allocation3], 1
    %155 = vsyncpa [#allocation6], 1
    %156 = vsyncpa [#allocation4], 1

</llo_original>
